<compile_context>
chip_gen: v7x
topology: tpu7x:2x2x1
jax: 0.10.0
libtpu: 0.0.40
codegen_flags: <defaults>
</compile_context>

<pallas_src>
import jax
import jax.numpy as jnp
from jax.experimental import pallas as pl
from jax.experimental.pallas import tpu as pltpu


def _round_up(x, m):
    return (x + m - 1) // m * m


def _choose_tm(rows, tile_rows):
    """Row-tile size: multiple of 128, capped so the grid has >=2 steps when possible."""
    rows_128 = _round_up(max(rows, 1), 128)
    tm = min(_round_up(max(tile_rows, 128), 128), rows_128)
    if rows_128 >= 256:
        # keep at least 2 grid steps so both TensorCores participate on v7x
        tm = min(tm, _round_up(rows_128 // 2, 128))
    return tm


def _discriminator_kernel(x_ref, w1_ref, b1_ref, w2_ref, b2_ref, w3_ref, b3_ref, o_ref):
    """Fused 3-layer MLP on one (TM, pacdim) row tile.

    Layer 1: in-kernel bf16 cast of f32 x, bf16 x @ bf16 w1 on the MXU (f32 acc) + bias + LeakyReLU(0.2)
    Layer 2: bf16 h @ bf16 w2 on the MXU (f32 acc) + bias + LeakyReLU(0.2)
    Head   : VPU multiply + lane-reduce (Linear(d2, 1)) + Sigmoid, stored lane-dense.
    Dropout(0.5) layers are identity at inference time.
    """
    # Layer 1 (cast the f32 x tile to bf16 on the VPU; HBM stream stays f32-only)
    x = x_ref[...].astype(jnp.bfloat16)
    h = jnp.dot(x, w1_ref[...], preferred_element_type=jnp.float32) + b1_ref[...]
    h = jnp.where(h > 0.0, h, 0.2 * h)

    # Layer 2 (bf16 operands, f32 accumulation)
    h = jnp.dot(h.astype(jnp.bfloat16), w2_ref[...],
                preferred_element_type=jnp.float32) + b2_ref[...]
    h = jnp.where(h > 0.0, h, 0.2 * h)

    # Output head: Linear(d2, 1) + Sigmoid, as a VPU/XLU reduction (no 1-column matmul).
    logit = jnp.sum(h * w3_ref[...], axis=-1) + b3_ref[0]      # (TM,)
    o_ref[...] = jax.nn.sigmoid(logit)[None, :]                # lane-dense (1, TM) store
    # TODO(synk): training-mode Dropout(0.5) (stochastic masking) is omitted; eval semantics only.


def discriminator_forward(x, params, *, pac, tile_rows=4096):
    """x: (N, input_dim) float32; params: dict of w1,b1,w2,b2,w3,b3. Returns (N//pac, 1)."""
    n, input_dim = x.shape
    assert n % pac == 0, "batch must be divisible by pac"
    rows = n // pac
    pacdim = input_dim * pac
    x_folded = x.reshape(rows, pacdim)            # same as torch .view(-1, pacdim); no copy/pad

    d1 = params["w1"].shape[1]
    d2 = params["w2"].shape[1]

    # Tiny, resident operands: pre-cast weights for the MXU, keep biases/head in f32.
    w1 = params["w1"].astype(jnp.bfloat16)        # (pacdim, d1)
    w2 = params["w2"].astype(jnp.bfloat16)        # (d1, d2)
    b1 = params["b1"]                             # (1, d1) f32
    b2 = params["b2"]                             # (1, d2) f32
    w3 = params["w3"].reshape(1, d2)              # (d2, 1) -> (1, d2) f32
    b3 = params["b3"].reshape(1)                  # (1, 1)  -> (1,)   f32 (SMEM scalar)

    tm = _choose_tm(rows, tile_rows)
    num_tiles = pl.cdiv(rows, tm)
    out_cols = num_tiles * tm                     # output padded to full tiles (lane-dense stores)

    rows_work = out_cols
    flops = 2 * rows_work * (pacdim * d1 + d1 * d2 + d2)
    bytes_accessed = (rows_work * pacdim * 4      # f32 x stream (read once by the kernel)
                      + pacdim * d1 * 2           # bf16 w1
                      + d1 * d2 * 2               # bf16 w2
                      + (d1 + d2 + d2 + 1) * 4    # biases + head weight
                      + rows_work * 4)            # f32 output

    out = pl.pallas_call(
        _discriminator_kernel,
        out_shape=jax.ShapeDtypeStruct((1, out_cols), jnp.float32),
        grid=(num_tiles,),
        in_specs=[
            pl.BlockSpec((tm, pacdim), lambda i: (i, 0)),       # x: row-tiled, pipelined (f32)
            pl.BlockSpec((pacdim, d1), lambda i: (0, 0)),        # w1: resident (bf16)
            pl.BlockSpec((1, d1), lambda i: (0, 0)),             # b1: resident
            pl.BlockSpec((d1, d2), lambda i: (0, 0)),            # w2: resident (bf16)
            pl.BlockSpec((1, d2), lambda i: (0, 0)),             # b2: resident
            pl.BlockSpec((1, d2), lambda i: (0, 0)),             # w3 (row form): resident
            pl.BlockSpec(memory_space=pltpu.MemorySpace.SMEM),   # b3 scalar
        ],
        out_specs=pl.BlockSpec((1, tm), lambda i: (0, i)),        # lane-dense output blocks
        compiler_params=pltpu.CompilerParams(
            dimension_semantics=("parallel",),
            vmem_limit_bytes=32 * 1024 * 1024),
        cost_estimate=pl.CostEstimate(
            flops=flops, transcendentals=rows_work, bytes_accessed=bytes_accessed),
    )(x_folded, w1, b1, w2, b2, w3, b3)

    # Garbage logits from the (possibly partial) last tile are dropped here.
    return out[0, :rows].reshape(rows, 1)


def reference_forward_matched(x, params, *, pac):
    """Plain-JAX reference with identical numerics (same bf16 casts, f32 accumulation)."""
    n, input_dim = x.shape
    rows = n // pac
    h = x.reshape(rows, input_dim * pac)
    h = jnp.dot(h.astype(jnp.bfloat16), params["w1"].astype(jnp.bfloat16),
                preferred_element_type=jnp.float32) + params["b1"]
    h = jnp.where(h > 0.0, h, 0.2 * h)
    h = jnp.dot(h.astype(jnp.bfloat16), params["w2"].astype(jnp.bfloat16),
                preferred_element_type=jnp.float32) + params["b2"]
    h = jnp.where(h > 0.0, h, 0.2 * h)
    logit = jnp.sum(h * params["w3"].reshape(1, -1), axis=-1, keepdims=True) + params["b3"].reshape(1, 1)
    return jax.nn.sigmoid(logit)


def reference_forward_f32(x, params, *, pac):
    """Pure-float32 reference matching the PyTorch module exactly (no bf16)."""
    n, input_dim = x.shape
    h = x.reshape(n // pac, input_dim * pac)
    h = h @ params["w1"] + params["b1"]
    h = jnp.where(h > 0.0, h, 0.2 * h)
    h = h @ params["w2"] + params["b2"]
    h = jnp.where(h > 0.0, h, 0.2 * h)
    logit = h @ params["w3"] + params["b3"]
    return jax.nn.sigmoid(logit)


def init_params(key, input_dim, discriminator_dim, pac):
    """Deterministic init mimicking torch.nn.Linear default (U(-1/sqrt(fan_in), 1/sqrt(fan_in)))."""
    assert len(discriminator_dim) == 2, "this script instantiates a 2-hidden-layer discriminator"
    pacdim = input_dim * pac
    d1, d2 = discriminator_dim
    dims = [(pacdim, d1), (d1, d2), (d2, 1)]
    params = {}
    for i, (fan_in, fan_out) in enumerate(dims, start=1):
        key, kw, kb = jax.random.split(key, 3)
        bound = 1.0 / jnp.sqrt(jnp.float32(fan_in))
        params[f"w{i}"] = jax.random.uniform(kw, (fan_in, fan_out), jnp.float32, -bound, bound)
        params[f"b{i}"] = jax.random.uniform(kb, (1, fan_out), jnp.float32, -bound, bound)
    return params


if __name__ == "__main__":
    # Small, forward-consistent shapes: N=40 samples, input_dim=12, pac=10 -> pacdim=120
    input_dim = 12
    discriminator_dim = (64, 64)
    pac = 10
    batch = 40  # divisible by pac

    key = jax.random.PRNGKey(0)
    key, kx = jax.random.split(key)
    x = jax.random.normal(kx, (batch, input_dim), jnp.float32)

    params = init_params(key, input_dim, discriminator_dim, pac)

    out = discriminator_forward(x, params, pac=pac)
    out = jax.block_until_ready(out)
    assert out.shape == (batch // pac, 1), out.shape

    # Tight check against a reference with identical numerics (bf16 operands, f32 accumulate).
    ref_matched = reference_forward_matched(x, params, pac=pac)
    assert jnp.allclose(out, ref_matched, atol=1e-3, rtol=1e-3), "mismatch vs matched reference"

    # Looser check against the pure-f32 PyTorch-equivalent reference (bf16 rounding is intentional).
    ref_f32 = reference_forward_f32(x, params, pac=pac)
    assert jnp.allclose(out, ref_f32, atol=2e-2), "mismatch vs f32 reference"

    print("KERNEL_OK")
</pallas_src>

<mosaic_0001>
module attributes {stable_mosaic.version = 11 : i64} {
  func.func @_discriminator_kernel(%arg0: i32, %arg1: memref<128x120xf32, #tpu.memory_space<vmem>>, %arg2: memref<120x64xbf16, #tpu.memory_space<vmem>>, %arg3: memref<1x64xf32, #tpu.memory_space<vmem>>, %arg4: memref<64x64xbf16, #tpu.memory_space<vmem>>, %arg5: memref<1x64xf32, #tpu.memory_space<vmem>>, %arg6: memref<1x64xf32, #tpu.memory_space<vmem>>, %arg7: memref<1xf32, #tpu.memory_space<smem>>, %arg8: memref<1x128xf32, #tpu.memory_space<vmem>>) attributes {dimension_semantics = [#tpu.dimension_semantics<parallel>], iteration_bounds = array<i64: 1>, scalar_prefetch = 0 : i64, scratch_operands = 0 : i64, tpu.core_type = #tpu.core_type<tc>, window_params = [{transform_indices = @transform_0, window_bounds = array<i64: 128, 120>}, {pipeline_mode = #tpu.pipeline_mode<synchronous>, transform_indices = @transform_1, window_bounds = array<i64: 120, 64>}, {pipeline_mode = #tpu.pipeline_mode<synchronous>, transform_indices = @transform_2, window_bounds = array<i64: 1, 64>}, {pipeline_mode = #tpu.pipeline_mode<synchronous>, transform_indices = @transform_3, window_bounds = array<i64: 64, 64>}, {pipeline_mode = #tpu.pipeline_mode<synchronous>, transform_indices = @transform_4, window_bounds = array<i64: 1, 64>}, {pipeline_mode = #tpu.pipeline_mode<synchronous>, transform_indices = @transform_5, window_bounds = array<i64: 1, 64>}, {transform_indices = @transform_6, window_bounds = array<i64: 1>}, {transform_indices = @transform_7, window_bounds = array<i64: 1, 128>}]} {
    %c0 = arith.constant 0 : index
    %c0_0 = arith.constant 0 : index
    %0 = vector.load %arg1[%c0, %c0_0] : memref<128x120xf32, #tpu.memory_space<vmem>>, vector<128x120xf32>
    %1 = arith.truncf %0 : vector<128x120xf32> to vector<128x120xbf16>
    %c0_1 = arith.constant 0 : index
    %c0_2 = arith.constant 0 : index
    %2 = vector.load %arg2[%c0_1, %c0_2] : memref<120x64xbf16, #tpu.memory_space<vmem>>, vector<120x64xbf16>
    %cst = arith.constant dense<0.000000e+00> : vector<128x64xf32>
    %3 = tpu.matmul %1, %2, %cst {dimension_numbers = #tpu.dot_dimension_numbers<[1], [0], [0], [1], [0, 0, 1, 1], [], []>} : vector<128x120xbf16>, vector<120x64xbf16>, vector<128x64xf32> -> vector<128x64xf32>
    %c0_3 = arith.constant 0 : index
    %c0_4 = arith.constant 0 : index
    %4 = vector.load %arg3[%c0_3, %c0_4] : memref<1x64xf32, #tpu.memory_space<vmem>>, vector<1x64xf32>
    %5 = vector.broadcast %4 : vector<1x64xf32> to vector<128x64xf32>
    %6 = arith.addf %3, %5 : vector<128x64xf32>
    %cst_5 = arith.constant 0.000000e+00 : f32
    %7 = vector.broadcast %cst_5 : f32 to vector<128x64xf32>
    %8 = arith.cmpf ogt, %6, %7 : vector<128x64xf32>
    %cst_6 = arith.constant 2.000000e-01 : f32
    %9 = vector.broadcast %cst_6 : f32 to vector<128x64xf32>
    %10 = arith.mulf %9, %6 : vector<128x64xf32>
    %11 = arith.select %8, %6, %10 : vector<128x64xi1>, vector<128x64xf32>
    %12 = arith.truncf %11 : vector<128x64xf32> to vector<128x64xbf16>
    %c0_7 = arith.constant 0 : index
    %c0_8 = arith.constant 0 : index
    %13 = vector.load %arg4[%c0_7, %c0_8] : memref<64x64xbf16, #tpu.memory_space<vmem>>, vector<64x64xbf16>
    %cst_9 = arith.constant dense<0.000000e+00> : vector<128x64xf32>
    %14 = tpu.matmul %12, %13, %cst_9 {dimension_numbers = #tpu.dot_dimension_numbers<[1], [0], [0], [1], [0, 0, 1, 1], [], []>} : vector<128x64xbf16>, vector<64x64xbf16>, vector<128x64xf32> -> vector<128x64xf32>
    %c0_10 = arith.constant 0 : index
    %c0_11 = arith.constant 0 : index
    %15 = vector.load %arg5[%c0_10, %c0_11] : memref<1x64xf32, #tpu.memory_space<vmem>>, vector<1x64xf32>
    %16 = vector.broadcast %15 : vector<1x64xf32> to vector<128x64xf32>
    %17 = arith.addf %14, %16 : vector<128x64xf32>
    %cst_12 = arith.constant 0.000000e+00 : f32
    %18 = vector.broadcast %cst_12 : f32 to vector<128x64xf32>
    %19 = arith.cmpf ogt, %17, %18 : vector<128x64xf32>
    %cst_13 = arith.constant 2.000000e-01 : f32
    %20 = vector.broadcast %cst_13 : f32 to vector<128x64xf32>
    %21 = arith.mulf %20, %17 : vector<128x64xf32>
    %22 = arith.select %19, %17, %21 : vector<128x64xi1>, vector<128x64xf32>
    %c0_14 = arith.constant 0 : index
    %c0_15 = arith.constant 0 : index
    %23 = vector.load %arg6[%c0_14, %c0_15] : memref<1x64xf32, #tpu.memory_space<vmem>>, vector<1x64xf32>
    %24 = vector.broadcast %23 : vector<1x64xf32> to vector<128x64xf32>
    %25 = arith.mulf %22, %24 : vector<128x64xf32>
    %cst_16 = arith.constant dense<0.000000e+00> : vector<128xf32>
    %26 = vector.multi_reduction <add>, %25, %cst_16 [1] : vector<128x64xf32> to vector<128xf32>
    %c0_17 = arith.constant 0 : index
    %27 = memref.load %arg7[%c0_17] : memref<1xf32, #tpu.memory_space<smem>>
    %28 = vector.broadcast %27 : f32 to vector<128xf32>
    %29 = arith.addf %26, %28 : vector<128xf32>
    %30 = arith.negf %29 : vector<128xf32>
    %31 = math.exp %30 : vector<128xf32>
    %cst_18 = arith.constant 1.000000e+00 : f32
    %32 = vector.broadcast %cst_18 : f32 to vector<128xf32>
    %33 = arith.addf %32, %31 : vector<128xf32>
    %34 = arith.divf %32, %33 : vector<128xf32>
    %35 = vector.shape_cast %34 : vector<128xf32> to vector<1x128xf32>
    %c0_19 = arith.constant 0 : index
    %c0_20 = arith.constant 0 : index
    %36 = vector.load %arg8[%c0_19, %c0_20] : memref<1x128xf32, #tpu.memory_space<vmem>>, vector<1x128xf32>
    tpu.vector_store %arg8[%c0_19, %c0_20], %35 {strides = array<i32>} : memref<1x128xf32, #tpu.memory_space<vmem>>, vector<1x128xf32>,
    return
  }
  func.func @transform_0(%arg0: i32) -> (i32, i32) {
    %c0_i32 = arith.constant 0 : i32
    %c0_i32_0 = arith.constant 0 : i32
    return %arg0, %c0_i32 : i32, i32
  }
  func.func @transform_1(%arg0: i32) -> (i32, i32) {
    %c0_i32 = arith.constant 0 : i32
    %c0_i32_0 = arith.constant 0 : i32
    %c0_i32_1 = arith.constant 0 : i32
    return %c0_i32, %c0_i32_0 : i32, i32
  }
  func.func @transform_2(%arg0: i32) -> (i32, i32) {
    %c0_i32 = arith.constant 0 : i32
    %c0_i32_0 = arith.constant 0 : i32
    %c0_i32_1 = arith.constant 0 : i32
    return %c0_i32, %c0_i32_0 : i32, i32
  }
  func.func @transform_3(%arg0: i32) -> (i32, i32) {
    %c0_i32 = arith.constant 0 : i32
    %c0_i32_0 = arith.constant 0 : i32
    %c0_i32_1 = arith.constant 0 : i32
    return %c0_i32, %c0_i32_0 : i32, i32
  }
  func.func @transform_4(%arg0: i32) -> (i32, i32) {
    %c0_i32 = arith.constant 0 : i32
    %c0_i32_0 = arith.constant 0 : i32
    %c0_i32_1 = arith.constant 0 : i32
    return %c0_i32, %c0_i32_0 : i32, i32
  }
  func.func @transform_5(%arg0: i32) -> (i32, i32) {
    %c0_i32 = arith.constant 0 : i32
    %c0_i32_0 = arith.constant 0 : i32
    %c0_i32_1 = arith.constant 0 : i32
    return %c0_i32, %c0_i32_0 : i32, i32
  }
  func.func @transform_6(%arg0: i32) -> i32 {
    %c0_i32 = arith.constant 0 : i32
    %c0_i32_0 = arith.constant 0 : i32
    return %c0_i32 : i32
  }
  func.func @transform_7(%arg0: i32) -> (i32, i32) {
    %c0_i32 = arith.constant 0 : i32
    %c0_i32_0 = arith.constant 0 : i32
    return %c0_i32, %arg0 : i32, i32
  }
}

</mosaic_0001>

<llo_original>
// kernel: tpu_custom_call.1
$region0: #{tpu_custom_call.1}
  #allocation0 [shape = 'u32[]', space=smem, size = 0x4, offset = 0x4, fixed_abs, tag = 'smem constant byte address 0x4 - core index']
  #allocation1 [shape = 'u32[144,128]{1,0:T(1,128)}', space=vmem, size = 0x12000, scoped, tag = 'internal scratch']
  #allocation2 [shape = 'f32[1]{0:T(128)S(6)}', space=smem, size = 0x200, scoped, tag = 'scoped memory for tpu_custom_call.1']
  %s0 = inlined_call_operand.vmem [shape: f32[4,120], index: 0, kind: input, shape index: {}]
  %s1 = inlined_call_operand.vmem [shape: bf16[120,64], index: 1, kind: input, shape index: {}]
  %s2 = inlined_call_operand.vmem [shape: f32[1,64], index: 2, kind: input, shape index: {}]
  %s3 = inlined_call_operand.vmem [shape: bf16[64,64], index: 3, kind: input, shape index: {}]
  %s4 = inlined_call_operand.vmem [shape: f32[1,64], index: 4, kind: input, shape index: {}]
  %s5 = inlined_call_operand.vmem [shape: f32[1,64], index: 5, kind: input, shape index: {}]
  %s6 = inlined_call_operand.<no memory space> [shape: f32[1], index: 6, kind: input, shape index: {}]
  %s7 = inlined_call_operand.hbm [shape: f32[1,128], index: 7, kind: output, shape index: {}]
  %s8 = sld [smem:[#allocation0]]
  $region38: #{tpu_custom_call.1} parent=0
    _
  %s10 = ssub.s32 1, %s8
  %s11 = scalar_select 0, %s10, %s8
  %12 = sst [smem:[#allocation2]] %s6
  $region1: #{tpu_custom_call.1} parent=0
    #allocation3 [shape = 'u8[512]{0}', space=vmem, size = 0x400, scoped, tag = 'output window, operand 0, single buffered']
    #allocation4 [shape = 's32[1]{0}', space=sflag, size = 0x4, scoped, tag = 'scoped memory for tpu_custom_call.1']
    %13 = vsyncpa [#allocation4], 0
    // Predicated region
    $region2: #{tpu_custom_call.1} parent=1 // pred_check
      _
    $region3: #{tpu_custom_call.1} parent=1 // pred_check_branch
      %15 = sbr.rel (0) target = $region5
    $region4: #{tpu_custom_call.1} parent=1 // pred_region
      _
    $region5: #{tpu_custom_call.1} parent=1 // pred_fallthru
      _
    // Predicated region
    $region6: #{tpu_custom_call.1} parent=1 // pred_check
      _
    $region7: #{tpu_custom_call.1} parent=1 // pred_check_branch
      %17 = sbr.rel (0) target = $region9
    $region8: #{tpu_custom_call.1} parent=1 // pred_region
      _
    $region9: #{tpu_custom_call.1} parent=1 // pred_fallthru
      _
    // Predicated region
    $region10: #{tpu_custom_call.1} parent=1 // pred_check
      _
    $region11: #{tpu_custom_call.1} parent=1 // pred_check_branch
      %19 = sbr.rel (0) target = $region13
    $region12: #{tpu_custom_call.1} parent=1 // pred_region
      _
    $region13: #{tpu_custom_call.1} parent=1 // pred_fallthru
      _
    // Predicated region
    $region14: #{tpu_custom_call.1} parent=1 // pred_check
      _
    $region15: #{tpu_custom_call.1} parent=1 // pred_check_branch
      %21 = sbr.rel (0) target = $region17
    $region16: #{tpu_custom_call.1} parent=1 // pred_region
      _
    $region17: #{tpu_custom_call.1} parent=1 // pred_fallthru
      _
    // Predicated region
    $region18: #{tpu_custom_call.1} parent=1 // pred_check
      _
    $region19: #{tpu_custom_call.1} parent=1 // pred_check_branch
      %23 = sbr.rel (0) target = $region21
    $region20: #{tpu_custom_call.1} parent=1 // pred_region
      _
    $region21: #{tpu_custom_call.1} parent=1 // pred_fallthru
      _
    // Predicated region
    $region22: #{tpu_custom_call.1} parent=1 // pred_check
      _
    $region23: #{tpu_custom_call.1} parent=1 // pred_check_branch
      %25 = sbr.rel (0) target = $region25
    $region24: #{tpu_custom_call.1} parent=1 // pred_region
      _
    $region25: #{tpu_custom_call.1} parent=1 // pred_fallthru
      _
    // Predicated region
    $region26: #{tpu_custom_call.1} parent=1 // pred_check
      _
    $region27: #{tpu_custom_call.1} parent=1 // pred_check_branch
      %27 = sbr.rel (0) target = $region29
    $region28: #{tpu_custom_call.1} parent=1 // pred_region
      _
    $region29: #{tpu_custom_call.1} parent=1 // pred_fallthru
      _
    %v29 = vld [vmem:[%s0] sm:$0xff]
    %v30 = vld [vmem:[%s0 + $0x8] sm:$0xff]
    %v31 = vld [vmem:[%s0 + $0x10] sm:$0xff]
    %v32 = vld [vmem:[%s0 + $0x18] sm:$0xff]
    %v33 = vld [vmem:[%s0 + $0x20] sm:$0xff]
    %v34 = vld [vmem:[%s0 + $0x28] sm:$0xff]
    %v35 = vld [vmem:[%s0 + $0x30] sm:$0xff]
    %v36 = vld [vmem:[%s0 + $0x38] sm:$0xff]
    %v37 = vld [vmem:[%s0 + $0x40] sm:$0xff]
    %v38 = vld [vmem:[%s0 + $0x48] sm:$0xff]
    %v39 = vld [vmem:[%s0 + $0x50] sm:$0xff]
    %v40 = vld [vmem:[%s0 + $0x58] sm:$0xff]
    %v41 = vld [vmem:[%s0 + $0x60] sm:$0xff]
    %v42 = vld [vmem:[%s0 + $0x68] sm:$0xff]
    %v43 = vld [vmem:[%s0 + $0x70] sm:$0xff]
    %v44 = vld [vmem:[%s0 + $0x78] sm:$0xff]
    %v45 = vpack.c.bf16 %v30, %v29
    %v46 = vpack.c.bf16 %v32, %v31
    %v47 = vpack.c.bf16 %v34, %v33
    %v48 = vpack.c.bf16 %v36, %v35
    %v49 = vpack.c.bf16 %v38, %v37
    %v50 = vpack.c.bf16 %v40, %v39
    %v51 = vpack.c.bf16 %v42, %v41
    %v52 = vpack.c.bf16 %v44, %v43
    %v53 = vld [vmem:[%s1] sm:$0xf]
    %v54 = vld [vmem:[%s1 + $0x4] sm:$0xf]
    %v55 = vld [vmem:[%s1 + $0x8] sm:$0xf]
    %v56 = vld [vmem:[%s1 + $0xc] sm:$0xf]
    %v57 = vld [vmem:[%s1 + $0x10] sm:$0xf]
    %v58 = vld [vmem:[%s1 + $0x14] sm:$0xf]
    %v59 = vld [vmem:[%s1 + $0x18] sm:$0xf]
    %v60 = vld [vmem:[%s1 + $0x1c] sm:$0xf]
    %v61 = vld [vmem:[%s1 + $0x20] sm:$0xf]
    %v62 = vld [vmem:[%s1 + $0x24] sm:$0xf]
    %v63 = vld [vmem:[%s1 + $0x28] sm:$0xf]
    %v64 = vld [vmem:[%s1 + $0x2c] sm:$0xf]
    %v65 = vld [vmem:[%s1 + $0x30] sm:$0xf]
    %v66 = vld [vmem:[%s1 + $0x34] sm:$0xf]
    %v67 = vld [vmem:[%s1 + $0x38] sm:$0xf]
    %v68 = vld [vmem:[%s2] sm:$0x1]
    %v70 = vlaneseq
    %v71 = vshrl.u32 %v70, 7
    %v72 = vsub.s32 0, %v71
    %v73 = vrot.slane %v68, %v72
    %v90 = vunpack.c.l.b16 %v53
    %v91 = vunpack.c.l.b16 %v54
    %v92 = vunpack.c.l.b16 %v55
    %v93 = vunpack.c.l.b16 %v56
    %v94 = vunpack.c.l.b16 %v57
    %v95 = vunpack.c.l.b16 %v58
    %v96 = vunpack.c.l.b16 %v59
    %v97 = vunpack.c.l.b16 %v60
    %v98 = vunpack.c.l.b16 %v61
    %v99 = vunpack.c.l.b16 %v62
    %v100 = vunpack.c.l.b16 %v63
    %v101 = vunpack.c.l.b16 %v64
    %v102 = vunpack.c.l.b16 %v65
    %v103 = vunpack.c.l.b16 %v66
    %v104 = vunpack.c.l.b16 %v67
    %v105 = vpack.c.b16 %v91, %v90
    %v106 = vpack.c.b16 %v93, %v92
    %v107 = vpack.c.b16 %v95, %v94
    %v108 = vpack.c.b16 %v97, %v96
    %v109 = vpack.c.b16 %v99, %v98
    %v110 = vpack.c.b16 %v101, %v100
    %v111 = vpack.c.b16 %v103, %v102
    %v112 = vpack.c.b16 %v104, %v104
    %vm120 = vcmask 982016
    %v122 = vsel %vm120, %v45, 0
    %v125 = vsel %vm120, %v46, 0
    %v128 = vsel %vm120, %v47, 0
    %v131 = vsel %vm120, %v48, 0
    %v134 = vsel %vm120, %v49, 0
    %v137 = vsel %vm120, %v50, 0
    %v140 = vsel %vm120, %v51, 0
    %v143 = vsel %vm120, %v52, 0
    %vm145 = vcmask 1043456
    %v147 = vsel %vm145, %v112, 0
    %149 = vmatprep.subr.bf16.mxu0 0
    %150 = vmatpush1.bf16.msra.mxu0 %v105
    %151 = vmatprep.subr.bf16.mxu0 0
    %152 = vmatpush1.bf16.msra.mxu0 %v106
    %153 = vmatprep.subr.bf16.mxu0 0
    %154 = vmatpush1.bf16.msra.mxu0 %v107
    %155 = vmatprep.subr.bf16.mxu0 0
    %156 = vmatpush1.bf16.msra.mxu0 %v108
    %157 = vmatprep.subr.bf16.mxu0 0
    %158 = vmatpush1.bf16.msra.mxu0 %v109
    %159 = vmatprep.subr.bf16.mxu0 0
    %160 = vmatpush1.bf16.msra.mxu0 %v110
    %161 = vmatprep.subr.bf16.mxu0 0
    %162 = vmatpush1.bf16.msra.mxu0 %v111
    %163 = vmatprep.subr.bf16.mxu0 0
    %164 = vmatpush1.bf16.msra.mxu0 %v147
    %165 = vmatprep.subr.bf16.mxu0 0
    %166 = vmatpush1.bf16.msra.mxu0 0
    %167 = vmatprep.subr.bf16.mxu0 0
    %168 = vmatpush1.bf16.msra.mxu0 0
    %169 = vmatprep.subr.bf16.mxu0 0
    %170 = vmatpush1.bf16.msra.mxu0 0
    %171 = vmatprep.subr.bf16.mxu0 0
    %172 = vmatpush1.bf16.msra.mxu0 0
    %173 = vmatprep.subr.bf16.mxu0 0
    %174 = vmatpush1.bf16.msra.mxu0 0
    %175 = vmatprep.subr.bf16.mxu0 0
    %176 = vmatpush1.bf16.msra.mxu0 0
    %177 = vmatprep.subr.bf16.mxu0 0
    %178 = vmatpush1.bf16.msra.mxu0 0
    %179 = vmatprep.subr.bf16.mxu0 0
    %180 = vmatpush1.bf16.msra.mxu0 0
    %181 = vmatprep.mubr.bf16.mxu0 0
    %182 = vmatmul.mubr.bf16.gmra.mrb[0].mxu0 %v122
    %v183 = vpop.f32.mrb[0].mxu0
    %v184 = vadd.f32 %v73, %v183
    %v185 = vpop.f32.mrb[0].mxu0
    %v186 = vpop.f32.mrb[0].mxu0
    %v187 = vadd.f32 %v73, %v186
    %v188 = vpop.f32.mrb[0].mxu0
    %189 = vmatprep.mubr.bf16.mxu0 0
    %190 = vmatmul.mubr.bf16.gmra.mrb[0].mxu0 %v125
    %v191 = vpop.f32.mrb[0].mxu0
    %v192 = vadd.f32 %v73, %v191
    %v193 = vpop.f32.mrb[0].mxu0
    %v194 = vpop.f32.mrb[0].mxu0
    %v195 = vadd.f32 %v73, %v194
    %v196 = vpop.f32.mrb[0].mxu0
    %197 = vmatprep.mubr.bf16.mxu0 0
    %198 = vmatmul.mubr.bf16.gmra.mrb[0].mxu0 %v128
    %v199 = vpop.f32.mrb[0].mxu0
    %v200 = vadd.f32 %v73, %v199
    %v201 = vpop.f32.mrb[0].mxu0
    %v202 = vpop.f32.mrb[0].mxu0
    %v203 = vadd.f32 %v73, %v202
    %v204 = vpop.f32.mrb[0].mxu0
    %205 = vmatprep.mubr.bf16.mxu0 0
    %206 = vmatmul.mubr.bf16.gmra.mrb[0].mxu0 %v131
    %v207 = vpop.f32.mrb[0].mxu0
    %v208 = vadd.f32 %v73, %v207
    %v209 = vpop.f32.mrb[0].mxu0
    %v210 = vpop.f32.mrb[0].mxu0
    %v211 = vadd.f32 %v73, %v210
    %v212 = vpop.f32.mrb[0].mxu0
    %213 = vmatprep.mubr.bf16.mxu0 0
    %214 = vmatmul.mubr.bf16.gmra.mrb[0].mxu0 %v134
    %v215 = vpop.f32.mrb[0].mxu0
    %v216 = vadd.f32 %v73, %v215
    %v217 = vpop.f32.mrb[0].mxu0
    %v218 = vpop.f32.mrb[0].mxu0
    %v219 = vadd.f32 %v73, %v218
    %v220 = vpop.f32.mrb[0].mxu0
    %221 = vmatprep.mubr.bf16.mxu0 0
    %222 = vmatmul.mubr.bf16.gmra.mrb[0].mxu0 %v137
    %v223 = vpop.f32.mrb[0].mxu0
    %v224 = vadd.f32 %v73, %v223
    %v225 = vpop.f32.mrb[0].mxu0
    %v226 = vpop.f32.mrb[0].mxu0
    %v227 = vadd.f32 %v73, %v226
    %v228 = vpop.f32.mrb[0].mxu0
    %229 = vmatprep.mubr.bf16.mxu0 0
    %230 = vmatmul.mubr.bf16.gmra.mrb[0].mxu0 %v140
    %v231 = vpop.f32.mrb[0].mxu0
    %v232 = vadd.f32 %v73, %v231
    %v233 = vpop.f32.mrb[0].mxu0
    %v234 = vpop.f32.mrb[0].mxu0
    %v235 = vadd.f32 %v73, %v234
    %v236 = vpop.f32.mrb[0].mxu0
    %237 = vmatprep.mubr.bf16.mxu0 0
    %238 = vmatmul.mubr.bf16.gmra.mrb[0].mxu0 %v143
    %v239 = vpop.f32.mrb[0].mxu0
    %v240 = vadd.f32 %v73, %v239
    %v241 = vpop.f32.mrb[0].mxu0
    %v242 = vpop.f32.mrb[0].mxu0
    %v243 = vadd.f32 %v73, %v242
    %v244 = vpop.f32.mrb[0].mxu0
    %245 = vdwg.mxu0
    %vm246 = vcmp.gt.f32.partialorder %v184, 0.0
    %vm247 = vcmp.gt.f32.partialorder %v187, 0.0
    %vm248 = vcmp.gt.f32.partialorder %v192, 0.0
    %vm249 = vcmp.gt.f32.partialorder %v195, 0.0
    %vm250 = vcmp.gt.f32.partialorder %v200, 0.0
    %vm251 = vcmp.gt.f32.partialorder %v203, 0.0
    %vm252 = vcmp.gt.f32.partialorder %v208, 0.0
    %vm253 = vcmp.gt.f32.partialorder %v211, 0.0
    %vm254 = vcmp.gt.f32.partialorder %v216, 0.0
    %vm255 = vcmp.gt.f32.partialorder %v219, 0.0
    %vm256 = vcmp.gt.f32.partialorder %v224, 0.0
    %vm257 = vcmp.gt.f32.partialorder %v227, 0.0
    %vm258 = vcmp.gt.f32.partialorder %v232, 0.0
    %vm259 = vcmp.gt.f32.partialorder %v235, 0.0
    %vm260 = vcmp.gt.f32.partialorder %v240, 0.0
    %vm261 = vcmp.gt.f32.partialorder %v243, 0.0
    %v262 = vmul.f32 %v184, 0.2
    %v263 = vmul.f32 %v187, 0.2
    %v264 = vmul.f32 %v192, 0.2
    %v265 = vmul.f32 %v195, 0.2
    %v266 = vmul.f32 %v200, 0.2
    %v267 = vmul.f32 %v203, 0.2
    %v268 = vmul.f32 %v208, 0.2
    %v269 = vmul.f32 %v211, 0.2
    %v270 = vmul.f32 %v216, 0.2
    %v271 = vmul.f32 %v219, 0.2
    %v272 = vmul.f32 %v224, 0.2
    %v273 = vmul.f32 %v227, 0.2
    %v274 = vmul.f32 %v232, 0.2
    %v275 = vmul.f32 %v235, 0.2
    %v276 = vmul.f32 %v240, 0.2
    %v277 = vmul.f32 %v243, 0.2
    %v278 = vsel %vm246, %v184, %v262
    %v279 = vsel %vm247, %v187, %v263
    %v280 = vsel %vm248, %v192, %v264
    %v281 = vsel %vm249, %v195, %v265
    %v282 = vsel %vm250, %v200, %v266
    %v283 = vsel %vm251, %v203, %v267
    %v284 = vsel %vm252, %v208, %v268
    %v285 = vsel %vm253, %v211, %v269
    %v286 = vsel %vm254, %v216, %v270
    %v287 = vsel %vm255, %v219, %v271
    %v288 = vsel %vm256, %v224, %v272
    %v289 = vsel %vm257, %v227, %v273
    %v290 = vsel %vm258, %v232, %v274
    %v291 = vsel %vm259, %v235, %v275
    %v292 = vsel %vm260, %v240, %v276
    %v293 = vsel %vm261, %v243, %v277
    %v294 = vpack.c.bf16 %v279, %v278
    %v295 = vpack.c.bf16 %v281, %v280
    %v296 = vpack.c.bf16 %v283, %v282
    %v297 = vpack.c.bf16 %v285, %v284
    %v298 = vpack.c.bf16 %v287, %v286
    %v299 = vpack.c.bf16 %v289, %v288
    %v300 = vpack.c.bf16 %v291, %v290
    %v301 = vpack.c.bf16 %v293, %v292
    %v302 = vld [vmem:[%s3] sm:$0xf]
    %v303 = vld [vmem:[%s3 + $0x4] sm:$0xf]
    %v304 = vld [vmem:[%s3 + $0x8] sm:$0xf]
    %v305 = vld [vmem:[%s3 + $0xc] sm:$0xf]
    %v306 = vld [vmem:[%s3 + $0x10] sm:$0xf]
    %v307 = vld [vmem:[%s3 + $0x14] sm:$0xf]
    %v308 = vld [vmem:[%s3 + $0x18] sm:$0xf]
    %v309 = vld [vmem:[%s3 + $0x1c] sm:$0xf]
    %v310 = vld [vmem:[%s4] sm:$0x1]
    %v312 = vlaneseq
    %v313 = vshrl.u32 %v312, 7
    %v314 = vsub.s32 0, %v313
    %v315 = vrot.slane %v310, %v314
    %v325 = vunpack.c.l.b16 %v302
    %v326 = vunpack.c.l.b16 %v303
    %v327 = vunpack.c.l.b16 %v304
    %v328 = vunpack.c.l.b16 %v305
    %v329 = vunpack.c.l.b16 %v306
    %v330 = vunpack.c.l.b16 %v307
    %v331 = vunpack.c.l.b16 %v308
    %v332 = vunpack.c.l.b16 %v309
    %v333 = vpack.c.b16 %v326, %v325
    %v334 = vpack.c.b16 %v328, %v327
    %v335 = vpack.c.b16 %v330, %v329
    %v336 = vpack.c.b16 %v332, %v331
    %vm341 = vcmask 523264
    %v343 = vsel %vm341, %v294, 0
    %v346 = vsel %vm341, %v295, 0
    %v349 = vsel %vm341, %v296, 0
    %v352 = vsel %vm341, %v297, 0
    %v355 = vsel %vm341, %v298, 0
    %v358 = vsel %vm341, %v299, 0
    %v361 = vsel %vm341, %v300, 0
    %v364 = vsel %vm341, %v301, 0
    %366 = vmatprep.subr.bf16.mxu0 0
    %367 = vmatpush1.bf16.msra.mxu0 %v333
    %368 = vmatprep.subr.bf16.mxu0 0
    %369 = vmatpush1.bf16.msra.mxu0 %v334
    %370 = vmatprep.subr.bf16.mxu0 0
    %371 = vmatpush1.bf16.msra.mxu0 %v335
    %372 = vmatprep.subr.bf16.mxu0 0
    %373 = vmatpush1.bf16.msra.mxu0 %v336
    %374 = vmatprep.subr.bf16.mxu0 0
    %375 = vmatpush1.bf16.msra.mxu0 0
    %376 = vmatprep.subr.bf16.mxu0 0
    %377 = vmatpush1.bf16.msra.mxu0 0
    %378 = vmatprep.subr.bf16.mxu0 0
    %379 = vmatpush1.bf16.msra.mxu0 0
    %380 = vmatprep.subr.bf16.mxu0 0
    %381 = vmatpush1.bf16.msra.mxu0 0
    %382 = vmatprep.subr.bf16.mxu0 0
    %383 = vmatpush1.bf16.msra.mxu0 0
    %384 = vmatprep.subr.bf16.mxu0 0
    %385 = vmatpush1.bf16.msra.mxu0 0
    %386 = vmatprep.subr.bf16.mxu0 0
    %387 = vmatpush1.bf16.msra.mxu0 0
    %388 = vmatprep.subr.bf16.mxu0 0
    %389 = vmatpush1.bf16.msra.mxu0 0
    %390 = vmatprep.subr.bf16.mxu0 0
    %391 = vmatpush1.bf16.msra.mxu0 0
    %392 = vmatprep.subr.bf16.mxu0 0
    %393 = vmatpush1.bf16.msra.mxu0 0
    %394 = vmatprep.subr.bf16.mxu0 0
    %395 = vmatpush1.bf16.msra.mxu0 0
    %396 = vmatprep.subr.bf16.mxu0 0
    %397 = vmatpush1.bf16.msra.mxu0 0
    %398 = vmatprep.mubr.bf16.mxu0 0
    %399 = vmatmul.mubr.bf16.gmra.mrb[0].mxu0 %v343
    %v400 = vpop.f32.mrb[0].mxu0
    %v401 = vadd.f32 %v315, %v400
    %v402 = vpop.f32.mrb[0].mxu0
    %v403 = vpop.f32.mrb[0].mxu0
    %v404 = vadd.f32 %v315, %v403
    %v405 = vpop.f32.mrb[0].mxu0
    %406 = vmatprep.mubr.bf16.mxu0 0
    %407 = vmatmul.mubr.bf16.gmra.mrb[0].mxu0 %v346
    %v408 = vpop.f32.mrb[0].mxu0
    %v409 = vadd.f32 %v315, %v408
    %v410 = vpop.f32.mrb[0].mxu0
    %v411 = vpop.f32.mrb[0].mxu0
    %v412 = vadd.f32 %v315, %v411
    %v413 = vpop.f32.mrb[0].mxu0
    %414 = vmatprep.mubr.bf16.mxu0 0
    %415 = vmatmul.mubr.bf16.gmra.mrb[0].mxu0 %v349
    %v416 = vpop.f32.mrb[0].mxu0
    %v417 = vadd.f32 %v315, %v416
    %v418 = vpop.f32.mrb[0].mxu0
    %v419 = vpop.f32.mrb[0].mxu0
    %v420 = vadd.f32 %v315, %v419
    %v421 = vpop.f32.mrb[0].mxu0
    %422 = vmatprep.mubr.bf16.mxu0 0
    %423 = vmatmul.mubr.bf16.gmra.mrb[0].mxu0 %v352
    %v424 = vpop.f32.mrb[0].mxu0
    %v425 = vadd.f32 %v315, %v424
    %v426 = vpop.f32.mrb[0].mxu0
    %v427 = vpop.f32.mrb[0].mxu0
    %v428 = vadd.f32 %v315, %v427
    %v429 = vpop.f32.mrb[0].mxu0
    %430 = vmatprep.mubr.bf16.mxu0 0
    %431 = vmatmul.mubr.bf16.gmra.mrb[0].mxu0 %v355
    %v432 = vpop.f32.mrb[0].mxu0
    %v433 = vadd.f32 %v315, %v432
    %v434 = vpop.f32.mrb[0].mxu0
    %v435 = vpop.f32.mrb[0].mxu0
    %v436 = vadd.f32 %v315, %v435
    %v437 = vpop.f32.mrb[0].mxu0
    %438 = vmatprep.mubr.bf16.mxu0 0
    %439 = vmatmul.mubr.bf16.gmra.mrb[0].mxu0 %v358
    %v440 = vpop.f32.mrb[0].mxu0
    %v441 = vadd.f32 %v315, %v440
    %v442 = vpop.f32.mrb[0].mxu0
    %v443 = vpop.f32.mrb[0].mxu0
    %v444 = vadd.f32 %v315, %v443
    %v445 = vpop.f32.mrb[0].mxu0
    %446 = vmatprep.mubr.bf16.mxu0 0
    %447 = vmatmul.mubr.bf16.gmra.mrb[0].mxu0 %v361
    %v448 = vpop.f32.mrb[0].mxu0
    %v449 = vadd.f32 %v315, %v448
    %v450 = vpop.f32.mrb[0].mxu0
    %v451 = vpop.f32.mrb[0].mxu0
    %v452 = vadd.f32 %v315, %v451
    %v453 = vpop.f32.mrb[0].mxu0
    %454 = vmatprep.mubr.bf16.mxu0 0
    %455 = vmatmul.mubr.bf16.gmra.mrb[0].mxu0 %v364
    %v456 = vpop.f32.mrb[0].mxu0
    %v457 = vadd.f32 %v315, %v456
    %v458 = vpop.f32.mrb[0].mxu0
    %v459 = vpop.f32.mrb[0].mxu0
    %v460 = vadd.f32 %v315, %v459
    %v461 = vpop.f32.mrb[0].mxu0
    %462 = vdwg.mxu0
    %vm463 = vcmp.gt.f32.partialorder %v401, 0.0
    %vm464 = vcmp.gt.f32.partialorder %v404, 0.0
    %vm465 = vcmp.gt.f32.partialorder %v409, 0.0
    %vm466 = vcmp.gt.f32.partialorder %v412, 0.0
    %vm467 = vcmp.gt.f32.partialorder %v417, 0.0
    %vm468 = vcmp.gt.f32.partialorder %v420, 0.0
    %vm469 = vcmp.gt.f32.partialorder %v425, 0.0
    %vm470 = vcmp.gt.f32.partialorder %v428, 0.0
    %vm471 = vcmp.gt.f32.partialorder %v433, 0.0
    %vm472 = vcmp.gt.f32.partialorder %v436, 0.0
    %vm473 = vcmp.gt.f32.partialorder %v441, 0.0
    %vm474 = vcmp.gt.f32.partialorder %v444, 0.0
    %vm475 = vcmp.gt.f32.partialorder %v449, 0.0
    %vm476 = vcmp.gt.f32.partialorder %v452, 0.0
    %vm477 = vcmp.gt.f32.partialorder %v457, 0.0
    %vm478 = vcmp.gt.f32.partialorder %v460, 0.0
    %v479 = vmul.f32 %v401, 0.2
    %v480 = vmul.f32 %v404, 0.2
    %v481 = vmul.f32 %v409, 0.2
    %v482 = vmul.f32 %v412, 0.2
    %v483 = vmul.f32 %v417, 0.2
    %v484 = vmul.f32 %v420, 0.2
    %v485 = vmul.f32 %v425, 0.2
    %v486 = vmul.f32 %v428, 0.2
    %v487 = vmul.f32 %v433, 0.2
    %v488 = vmul.f32 %v436, 0.2
    %v489 = vmul.f32 %v441, 0.2
    %v490 = vmul.f32 %v444, 0.2
    %v491 = vmul.f32 %v449, 0.2
    %v492 = vmul.f32 %v452, 0.2
    %v493 = vmul.f32 %v457, 0.2
    %v494 = vmul.f32 %v460, 0.2
    %v495 = vsel %vm463, %v401, %v479
    %v496 = vsel %vm464, %v404, %v480
    %v497 = vsel %vm465, %v409, %v481
    %v498 = vsel %vm466, %v412, %v482
    %v499 = vsel %vm467, %v417, %v483
    %v500 = vsel %vm468, %v420, %v484
    %v501 = vsel %vm469, %v425, %v485
    %v502 = vsel %vm470, %v428, %v486
    %v503 = vsel %vm471, %v433, %v487
    %v504 = vsel %vm472, %v436, %v488
    %v505 = vsel %vm473, %v441, %v489
    %v506 = vsel %vm474, %v444, %v490
    %v507 = vsel %vm475, %v449, %v491
    %v508 = vsel %vm476, %v452, %v492
    %v509 = vsel %vm477, %v457, %v493
    %v510 = vsel %vm478, %v460, %v494
    %v511 = vld [vmem:[%s5] sm:$0x1]
    %v513 = vlaneseq
    %v514 = vshrl.u32 %v513, 7
    %v515 = vsub.s32 0, %v514
    %v516 = vrot.slane %v511, %v515
    %v518 = vmul.f32 %v495, %v516
    %v519 = vmul.f32 %v496, %v516
    %v520 = vmul.f32 %v497, %v516
    %v521 = vmul.f32 %v498, %v516
    %v522 = vmul.f32 %v499, %v516
    %v523 = vmul.f32 %v500, %v516
    %v524 = vmul.f32 %v501, %v516
    %v525 = vmul.f32 %v502, %v516
    %v526 = vmul.f32 %v503, %v516
    %v527 = vmul.f32 %v504, %v516
    %v528 = vmul.f32 %v505, %v516
    %v529 = vmul.f32 %v506, %v516
    %v530 = vmul.f32 %v507, %v516
    %v531 = vmul.f32 %v508, %v516
    %v532 = vmul.f32 %v509, %v516
    %v533 = vmul.f32 %v510, %v516
    %v534 = vsel %vm341, %v518, 0.0
    %535 = vadd.xlane.f32.xlu0 %v534
    %v536 = vpop.xlane.xlu0 %535
    %v537 = vsel %vm341, %v519, 0.0
    %538 = vadd.xlane.f32.xlu0 %v537
    %v539 = vpop.xlane.xlu0 %538
    %v540 = vsel %vm341, %v520, 0.0
    %541 = vadd.xlane.f32.xlu0 %v540
    %v542 = vpop.xlane.xlu0 %541
    %v543 = vsel %vm341, %v521, 0.0
    %544 = vadd.xlane.f32.xlu0 %v543
    %v545 = vpop.xlane.xlu0 %544
    %v546 = vsel %vm341, %v522, 0.0
    %547 = vadd.xlane.f32.xlu0 %v546
    %v548 = vpop.xlane.xlu0 %547
    %v549 = vsel %vm341, %v523, 0.0
    %550 = vadd.xlane.f32.xlu0 %v549
    %v551 = vpop.xlane.xlu0 %550
    %v552 = vsel %vm341, %v524, 0.0
    %553 = vadd.xlane.f32.xlu0 %v552
    %v554 = vpop.xlane.xlu0 %553
    %v555 = vsel %vm341, %v525, 0.0
    %556 = vadd.xlane.f32.xlu0 %v555
    %v557 = vpop.xlane.xlu0 %556
    %v558 = vsel %vm341, %v526, 0.0
    %559 = vadd.xlane.f32.xlu0 %v558
    %v560 = vpop.xlane.xlu0 %559
    %v561 = vsel %vm341, %v527, 0.0
    %562 = vadd.xlane.f32.xlu0 %v561
    %v563 = vpop.xlane.xlu0 %562
    %v564 = vsel %vm341, %v528, 0.0
    %565 = vadd.xlane.f32.xlu0 %v564
    %v566 = vpop.xlane.xlu0 %565
    %v567 = vsel %vm341, %v529, 0.0
    %568 = vadd.xlane.f32.xlu0 %v567
    %v569 = vpop.xlane.xlu0 %568
    %v570 = vsel %vm341, %v530, 0.0
    %571 = vadd.xlane.f32.xlu0 %v570
    %v572 = vpop.xlane.xlu0 %571
    %v573 = vsel %vm341, %v531, 0.0
    %574 = vadd.xlane.f32.xlu0 %v573
    %v575 = vpop.xlane.xlu0 %574
    %v576 = vsel %vm341, %v532, 0.0
    %577 = vadd.xlane.f32.xlu0 %v576
    %v578 = vpop.xlane.xlu0 %577
    %v579 = vsel %vm341, %v533, 0.0
    %580 = vadd.xlane.f32.xlu0 %v579
    %v581 = vpop.xlane.xlu0 %580
    %s582 = sld [smem:[#allocation2]]
    %v583 = vstv %s582
    %v584 = vadd.f32 %v536, %v583
    %v585 = vadd.f32 %v539, %v583
    %v586 = vadd.f32 %v542, %v583
    %v587 = vadd.f32 %v545, %v583
    %v588 = vadd.f32 %v548, %v583
    %v589 = vadd.f32 %v551, %v583
    %v590 = vadd.f32 %v554, %v583
    %v591 = vadd.f32 %v557, %v583
    %v592 = vadd.f32 %v560, %v583
    %v593 = vadd.f32 %v563, %v583
    %v594 = vadd.f32 %v566, %v583
    %v595 = vadd.f32 %v569, %v583
    %v596 = vadd.f32 %v572, %v583
    %v597 = vadd.f32 %v575, %v583
    %v598 = vadd.f32 %v578, %v583
    %v599 = vadd.f32 %v581, %v583
    %v600 = vxor.u32 %v584, 2147483648
    %v601 = vxor.u32 %v585, 2147483648
    %v602 = vxor.u32 %v586, 2147483648
    %v603 = vxor.u32 %v587, 2147483648
    %v604 = vxor.u32 %v588, 2147483648
    %v605 = vxor.u32 %v589, 2147483648
    %v606 = vxor.u32 %v590, 2147483648
    %v607 = vxor.u32 %v591, 2147483648
    %v608 = vxor.u32 %v592, 2147483648
    %v609 = vxor.u32 %v593, 2147483648
    %v610 = vxor.u32 %v594, 2147483648
    %v611 = vxor.u32 %v595, 2147483648
    %v612 = vxor.u32 %v596, 2147483648
    %v613 = vxor.u32 %v597, 2147483648
    %v614 = vxor.u32 %v598, 2147483648
    %v615 = vxor.u32 %v599, 2147483648
    %v616 = vmul.f32 %v600, 1.442695
    %v617 = vpow.pop %v616
    %v618 = vmul.f32 %v601, 1.442695
    %v619 = vpow.pop %v618
    %v620 = vmul.f32 %v602, 1.442695
    %v621 = vpow.pop %v620
    %v622 = vmul.f32 %v603, 1.442695
    %v623 = vpow.pop %v622
    %v624 = vmul.f32 %v604, 1.442695
    %v625 = vpow.pop %v624
    %v626 = vmul.f32 %v605, 1.442695
    %v627 = vpow.pop %v626
    %v628 = vmul.f32 %v606, 1.442695
    %v629 = vpow.pop %v628
    %v630 = vmul.f32 %v607, 1.442695
    %v631 = vpow.pop %v630
    %v632 = vmul.f32 %v608, 1.442695
    %v633 = vpow.pop %v632
    %v634 = vmul.f32 %v609, 1.442695
    %v635 = vpow.pop %v634
    %v636 = vmul.f32 %v610, 1.442695
    %v637 = vpow.pop %v636
    %v638 = vmul.f32 %v611, 1.442695
    %v639 = vpow.pop %v638
    %v640 = vmul.f32 %v612, 1.442695
    %v641 = vpow.pop %v640
    %v642 = vmul.f32 %v613, 1.442695
    %v643 = vpow.pop %v642
    %v644 = vmul.f32 %v614, 1.442695
    %v645 = vpow.pop %v644
    %v646 = vmul.f32 %v615, 1.442695
    %v647 = vpow.pop %v646
    %v648 = vadd.f32 %v617, 1.0
    %v649 = vadd.f32 %v619, 1.0
    %v650 = vadd.f32 %v621, 1.0
    %v651 = vadd.f32 %v623, 1.0
    %v652 = vadd.f32 %v625, 1.0
    %v653 = vadd.f32 %v627, 1.0
    %v654 = vadd.f32 %v629, 1.0
    %v655 = vadd.f32 %v631, 1.0
    %v656 = vadd.f32 %v633, 1.0
    %v657 = vadd.f32 %v635, 1.0
    %v658 = vadd.f32 %v637, 1.0
    %v659 = vadd.f32 %v639, 1.0
    %v660 = vadd.f32 %v641, 1.0
    %v661 = vadd.f32 %v643, 1.0
    %v662 = vadd.f32 %v645, 1.0
    %v663 = vadd.f32 %v647, 1.0
    %v664 = vrcp.pop %v648
    %v665 = vmul.f32 1.0, %v664
    %v666 = vrcp.pop %v649
    %v667 = vmul.f32 1.0, %v666
    %v668 = vrcp.pop %v650
    %v669 = vmul.f32 1.0, %v668
    %v670 = vrcp.pop %v651
    %v671 = vmul.f32 1.0, %v670
    %v672 = vrcp.pop %v652
    %v673 = vmul.f32 1.0, %v672
    %v674 = vrcp.pop %v653
    %v675 = vmul.f32 1.0, %v674
    %v676 = vrcp.pop %v654
    %v677 = vmul.f32 1.0, %v676
    %v678 = vrcp.pop %v655
    %v679 = vmul.f32 1.0, %v678
    %v680 = vrcp.pop %v656
    %v681 = vmul.f32 1.0, %v680
    %v682 = vrcp.pop %v657
    %v683 = vmul.f32 1.0, %v682
    %v684 = vrcp.pop %v658
    %v685 = vmul.f32 1.0, %v684
    %v686 = vrcp.pop %v659
    %v687 = vmul.f32 1.0, %v686
    %v688 = vrcp.pop %v660
    %v689 = vmul.f32 1.0, %v688
    %v690 = vrcp.pop %v661
    %v691 = vmul.f32 1.0, %v690
    %v692 = vrcp.pop %v662
    %v693 = vmul.f32 1.0, %v692
    %v694 = vrcp.pop %v663
    %v695 = vmul.f32 1.0, %v694
    %v712 = vlaneseq
    %v713 = vand.u32 %v712, 127
    %v714 = vlaneseq
    %v715 = vshrl.u32 %v714, 7
    %v716 = vsub.s32 %v713, %v715
    %v717 = vrot.slane %v665, %v716
    %v718 = vadd.s32 %v713, 4294967288
    %v719 = vlaneseq
    %v720 = vshrl.u32 %v719, 7
    %v721 = vsub.s32 %v718, %v720
    %v722 = vrot.slane %v667, %v721
    %vm723 = vcmask 130112
    %v724 = vsel %vm723, %v722, %v717
    %v725 = vadd.s32 %v713, 4294967280
    %v726 = vlaneseq
    %v727 = vshrl.u32 %v726, 7
    %v728 = vsub.s32 %v725, %v727
    %v729 = vrot.slane %v669, %v728
    %vm730 = vcmask 195712
    %v731 = vsel %vm730, %v729, %v724
    %v732 = vadd.s32 %v713, 4294967272
    %v733 = vlaneseq
    %v734 = vshrl.u32 %v733, 7
    %v735 = vsub.s32 %v732, %v734
    %v736 = vrot.slane %v671, %v735
    %vm737 = vcmask 261312
    %v738 = vsel %vm737, %v736, %v731
    %v739 = vadd.s32 %v713, 4294967264
    %v740 = vlaneseq
    %v741 = vshrl.u32 %v740, 7
    %v742 = vsub.s32 %v739, %v741
    %v743 = vrot.slane %v673, %v742
    %vm744 = vcmask 326912
    %v745 = vsel %vm744, %v743, %v738
    %v746 = vadd.s32 %v713, 4294967256
    %v747 = vlaneseq
    %v748 = vshrl.u32 %v747, 7
    %v749 = vsub.s32 %v746, %v748
    %v750 = vrot.slane %v675, %v749
    %vm751 = vcmask 392512
    %v752 = vsel %vm751, %v750, %v745
    %v753 = vadd.s32 %v713, 4294967248
    %v754 = vlaneseq
    %v755 = vshrl.u32 %v754, 7
    %v756 = vsub.s32 %v753, %v755
    %v757 = vrot.slane %v677, %v756
    %vm758 = vcmask 458112
    %v759 = vsel %vm758, %v757, %v752
    %v760 = vadd.s32 %v713, 4294967240
    %v761 = vlaneseq
    %v762 = vshrl.u32 %v761, 7
    %v763 = vsub.s32 %v760, %v762
    %v764 = vrot.slane %v679, %v763
    %vm765 = vcmask 523712
    %v766 = vsel %vm765, %v764, %v759
    %v767 = vadd.s32 %v713, 4294967232
    %v768 = vlaneseq
    %v769 = vshrl.u32 %v768, 7
    %v770 = vsub.s32 %v767, %v769
    %v771 = vrot.slane %v681, %v770
    %vm772 = vcmask 589312
    %v773 = vsel %vm772, %v771, %v766
    %v774 = vadd.s32 %v713, 4294967224
    %v775 = vlaneseq
    %v776 = vshrl.u32 %v775, 7
    %v777 = vsub.s32 %v774, %v776
    %v778 = vrot.slane %v683, %v777
    %vm779 = vcmask 654912
    %v780 = vsel %vm779, %v778, %v773
    %v781 = vadd.s32 %v713, 4294967216
    %v782 = vlaneseq
    %v783 = vshrl.u32 %v782, 7
    %v784 = vsub.s32 %v781, %v783
    %v785 = vrot.slane %v685, %v784
    %vm786 = vcmask 720512
    %v787 = vsel %vm786, %v785, %v780
    %v788 = vadd.s32 %v713, 4294967208
    %v789 = vlaneseq
    %v790 = vshrl.u32 %v789, 7
    %v791 = vsub.s32 %v788, %v790
    %v792 = vrot.slane %v687, %v791
    %vm793 = vcmask 786112
    %v794 = vsel %vm793, %v792, %v787
    %v795 = vadd.s32 %v713, 4294967200
    %v796 = vlaneseq
    %v797 = vshrl.u32 %v796, 7
    %v798 = vsub.s32 %v795, %v797
    %v799 = vrot.slane %v689, %v798
    %vm800 = vcmask 851712
    %v801 = vsel %vm800, %v799, %v794
    %v802 = vadd.s32 %v713, 4294967192
    %v803 = vlaneseq
    %v804 = vshrl.u32 %v803, 7
    %v805 = vsub.s32 %v802, %v804
    %v806 = vrot.slane %v691, %v805
    %vm807 = vcmask 917312
    %v808 = vsel %vm807, %v806, %v801
    %v809 = vadd.s32 %v713, 4294967184
    %v810 = vlaneseq
    %v811 = vshrl.u32 %v810, 7
    %v812 = vsub.s32 %v809, %v811
    %v813 = vrot.slane %v693, %v812
    %vm814 = vcmask 982912
    %v815 = vsel %vm814, %v813, %v808
    %v816 = vadd.s32 %v713, 4294967176
    %v817 = vlaneseq
    %v818 = vshrl.u32 %v817, 7
    %v819 = vsub.s32 %v816, %v818
    %v820 = vrot.slane %v695, %v819
    %vm821 = vcmask 1048512
    %v822 = vsel %vm821, %v820, %v815
    %824 = vst [vmem:[#allocation3] sm:$0x1] %v822
    // Predicated region
    $region30: #{tpu_custom_call.1} parent=1 // pred_check
      _
    $region31: #{tpu_custom_call.1} parent=1 // pred_check_branch
      %826 = sbr.rel (0) target = $region33
    $region32: #{tpu_custom_call.1} parent=1 // pred_region
      %s828 = ssub.s32 16, 16
      %829 = vsyncadd [#allocation4], %s828
      %s831 = sshll.u32 [#allocation3], 4
      %s832 = int_to_ptr.vmem [resolvable:$true] %s831
      %834 = dma.vmem_to_hbm [thread:$0]  %s832, 16, %s7, [#allocation4]
    $region33: #{tpu_custom_call.1} parent=1 // pred_fallthru
      _
    // Predicated region
    $region34: #{tpu_custom_call.1} parent=1 // pred_check
      _
    $region35: #{tpu_custom_call.1} parent=1 // pred_check_branch
      %836 = sbr.rel (0) target = $region37
    $region36: #{tpu_custom_call.1} parent=1 // pred_region
      %837 = dma.done [#allocation4], 16
    $region37: #{tpu_custom_call.1} parent=1 // pred_fallthru
      _
    %838 = vsyncpa [#allocation4], 1

</llo_original>
